<compile_context>
chip_gen: v6e
topology: v6e:2x2x1
jax: 0.10.0
libtpu: 0.0.40
codegen_flags: <defaults>
</compile_context>

<pallas_src>
import jax
import jax.numpy as jnp
from jax.experimental import pallas as pl
from jax.experimental.pallas import tpu as pltpu

_LANE = 128
_SUBLANE = 8


def _round_up(x, m):
    return pl.cdiv(x, m) * m


def linear_kernel(x_ref, w_ref, b_ref, o_ref):
    # One batch tile: y = x_tile @ W + b, accumulated in f32 on the MXU.
    y = jnp.dot(x_ref[...], w_ref[...], preferred_element_type=jnp.float32)
    # Bias added exactly once per output tile (no K-reduction grid axis).
    o_ref[...] = (y + b_ref[...]).astype(o_ref.dtype)


def prepare_layer2_params(w, b, *, cast_bf16=False):
    """One-time weight prep (call once at init, NOT per forward).

    w: [hidden, out] (transpose of PyTorch weight), b: [out] or [1, out].
    Pads only the output dim to a lane multiple (128) so the kernel's output
    tile is lane-dense (unmasked vst).  K (hidden) is left unpadded.
    """
    hidden, out = w.shape
    n_pad = _round_up(out, _LANE)
    wp = jnp.pad(w, ((0, 0), (0, n_pad - out)))
    bp = jnp.pad(jnp.reshape(b, (1, out)), ((0, 0), (0, n_pad - out)))
    if cast_bf16:
        wp = wp.astype(jnp.bfloat16)
    return wp, bp


def _select_tm(batch, tm_max):
    """Pick the batch tile: big, MXU-aligned, >=2 tiles for large batches."""
    tm_max = max(256, (tm_max // 256) * 256)
    if batch <= 256:
        return _round_up(batch, _SUBLANE)
    if batch <= tm_max:
        # Keep at least 2 grid steps so both v7x TensorCores get work.
        return min(tm_max, _round_up(pl.cdiv(batch, 2), 256))
    return tm_max


def layer2_forward(x, wp, bp, out_features, *, tm=None, tm_max=1024,
                   cast_bf16=False):
    """Layer2.forward (x -> linear3(x)) as a Pallas TPU kernel.

    x:  [batch, hidden] f32
    wp: [hidden, n_pad] padded weight from prepare_layer2_params
    bp: [1, n_pad]      padded bias
    returns [batch, out_features] f32
    """
    batch, hidden = x.shape
    n_pad = wp.shape[1]
    assert wp.shape[0] == hidden and bp.shape == (1, n_pad)

    if tm is None:
        tm = _select_tm(batch, tm_max)
    tm = max(_SUBLANE, _round_up(tm, _SUBLANE))
    grid = (pl.cdiv(batch, tm),)

    if cast_bf16:
        # TODO(synk): bf16 inputs deviate slightly from PyTorch f32 numerics.
        x = x.astype(jnp.bfloat16)

    yp = pl.pallas_call(
        linear_kernel,
        out_shape=jax.ShapeDtypeStruct((batch, n_pad), jnp.float32),
        grid=grid,
        in_specs=[
            # x: tiled over batch only; full (unpadded) K per block.
            pl.BlockSpec((tm, hidden), lambda i: (i, 0)),
            # W and bias stay fully resident in VMEM across batch tiles.
            pl.BlockSpec((hidden, n_pad), lambda i: (0, 0)),
            pl.BlockSpec((1, n_pad), lambda i: (0, 0)),
        ],
        out_specs=pl.BlockSpec((tm, n_pad), lambda i: (i, 0)),
        compiler_params=pltpu.CompilerParams(
            dimension_semantics=("parallel",),  # batch tiles -> megacore/2 TCs
            vmem_limit_bytes=48 << 20,          # > v5e 16 MiB scoped default,
                                                # < v7x 64 MiB physical cap
        ),
    )(x, wp, bp)

    # Drop the lane padding on the output dim; batch rows are already exact
    # (partial last block writes are masked by Pallas).
    return yp[:, :out_features]


if __name__ == "__main__":
    # Small shapes consistent with Layer2: hidden_size_2 -> 10 output features.
    hidden_size_2 = 32   # small stand-in for the default 1000
    out_features = 10    # fixed by nn.Linear(hidden_size_2, 10)

    key = jax.random.PRNGKey(0)
    kx, kw, kb, kx2 = jax.random.split(key, 4)

    bound = 1.0 / (hidden_size_2 ** 0.5)
    # Weight stored as [hidden, out] (transpose of PyTorch's [out, hidden]).
    w = jax.random.uniform(kw, (hidden_size_2, out_features),
                           minval=-bound, maxval=bound, dtype=jnp.float32)
    b = jax.random.uniform(kb, (out_features,),
                           minval=-bound, maxval=bound, dtype=jnp.float32)

    # Pad weights once (not per call).
    wp, bp = prepare_layer2_params(w, b)

    # Case 1: small batch, single grid step, exact tile.
    batch = 8
    x = jax.random.normal(kx, (batch, hidden_size_2), dtype=jnp.float32)
    y = layer2_forward(x, wp, bp, out_features)
    jax.block_until_ready(y)
    y_ref = x @ w + b[None, :]
    assert y.shape == (batch, out_features)
    assert jnp.allclose(y, y_ref, atol=1e-5, rtol=1e-5)

    # Case 2: batch not a multiple of the tile -> multiple grid steps with a
    # masked partial last block (no wrapper-side padding of x).
    batch2 = 20
    x2 = jax.random.normal(kx2, (batch2, hidden_size_2), dtype=jnp.float32)
    y2 = layer2_forward(x2, wp, bp, out_features, tm=8)
    jax.block_until_ready(y2)
    y2_ref = x2 @ w + b[None, :]
    assert y2.shape == (batch2, out_features)
    assert jnp.allclose(y2, y2_ref, atol=1e-5, rtol=1e-5)

    print("KERNEL_OK")
</pallas_src>

<mosaic_0001>
module attributes {stable_mosaic.version = 11 : i64} {
  func.func @linear_kernel(%arg0: i32, %arg1: memref<8x32xf32, #tpu.memory_space<vmem>>, %arg2: memref<32x128xf32, #tpu.memory_space<vmem>>, %arg3: memref<1x128xf32, #tpu.memory_space<vmem>>, %arg4: memref<8x128xf32, #tpu.memory_space<vmem>>) attributes {dimension_semantics = [#tpu.dimension_semantics<parallel>], iteration_bounds = array<i64: 1>, scalar_prefetch = 0 : i64, scratch_operands = 0 : i64, tpu.core_type = #tpu.core_type<tc>, window_params = [{transform_indices = @transform_0, window_bounds = array<i64: 8, 32>}, {pipeline_mode = #tpu.pipeline_mode<synchronous>, transform_indices = @transform_1, window_bounds = array<i64: 32, 128>}, {pipeline_mode = #tpu.pipeline_mode<synchronous>, transform_indices = @transform_2, window_bounds = array<i64: 1, 128>}, {transform_indices = @transform_3, window_bounds = array<i64: 8, 128>}]} {
    %c0 = arith.constant 0 : index
    %c0_0 = arith.constant 0 : index
    %0 = vector.load %arg1[%c0, %c0_0] : memref<8x32xf32, #tpu.memory_space<vmem>>, vector<8x32xf32>
    %c0_1 = arith.constant 0 : index
    %c0_2 = arith.constant 0 : index
    %1 = vector.load %arg2[%c0_1, %c0_2] : memref<32x128xf32, #tpu.memory_space<vmem>>, vector<32x128xf32>
    %cst = arith.constant dense<0.000000e+00> : vector<8x128xf32>
    %2 = tpu.matmul %0, %1, %cst {dimension_numbers = #tpu.dot_dimension_numbers<[1], [0], [0], [1], [0, 0, 1, 1], [], []>} : vector<8x32xf32>, vector<32x128xf32>, vector<8x128xf32> -> vector<8x128xf32>
    %c0_3 = arith.constant 0 : index
    %c0_4 = arith.constant 0 : index
    %3 = vector.load %arg3[%c0_3, %c0_4] : memref<1x128xf32, #tpu.memory_space<vmem>>, vector<1x128xf32>
    %4 = vector.broadcast %3 : vector<1x128xf32> to vector<8x128xf32>
    %5 = arith.addf %2, %4 : vector<8x128xf32>
    %c0_5 = arith.constant 0 : index
    %c0_6 = arith.constant 0 : index
    %6 = vector.load %arg4[%c0_5, %c0_6] : memref<8x128xf32, #tpu.memory_space<vmem>>, vector<8x128xf32>
    tpu.vector_store %arg4[%c0_5, %c0_6], %5 {strides = array<i32>} : memref<8x128xf32, #tpu.memory_space<vmem>>, vector<8x128xf32>,
    return
  }
  func.func @transform_0(%arg0: i32) -> (i32, i32) {
    %c0_i32 = arith.constant 0 : i32
    %c0_i32_0 = arith.constant 0 : i32
    return %arg0, %c0_i32 : i32, i32
  }
  func.func @transform_1(%arg0: i32) -> (i32, i32) {
    %c0_i32 = arith.constant 0 : i32
    %c0_i32_0 = arith.constant 0 : i32
    %c0_i32_1 = arith.constant 0 : i32
    return %c0_i32, %c0_i32_0 : i32, i32
  }
  func.func @transform_2(%arg0: i32) -> (i32, i32) {
    %c0_i32 = arith.constant 0 : i32
    %c0_i32_0 = arith.constant 0 : i32
    %c0_i32_1 = arith.constant 0 : i32
    return %c0_i32, %c0_i32_0 : i32, i32
  }
  func.func @transform_3(%arg0: i32) -> (i32, i32) {
    %c0_i32 = arith.constant 0 : i32
    %c0_i32_0 = arith.constant 0 : i32
    return %arg0, %c0_i32 : i32, i32
  }
}

</mosaic_0001>

<llo_original>
// kernel: tpu_custom_call.1
$region0: #{tpu_custom_call.1}
  #allocation0 [shape = 'u32[]', space=smem, size = 0x4, offset = 0x4, fixed_abs, tag = 'smem constant byte address 0x4 - core index']
  #allocation1 [shape = 'u32[144,128]{1,0:T(1,128)}', space=vmem, size = 0x12000, scoped, tag = 'internal scratch']
  %s0 = inlined_call_operand.hbm [shape: f32[8,32], index: 0, kind: input, shape index: {}]
  %s1 = inlined_call_operand.hbm [shape: f32[32,128], index: 1, kind: input, shape index: {}]
  %s2 = inlined_call_operand.vmem [shape: f32[1,128], index: 2, kind: input, shape index: {}]
  %s3 = inlined_call_operand.hbm [shape: f32[8,128], index: 3, kind: output, shape index: {}]
  %s4 = sld [smem:[#allocation0]]
  $region30: #{tpu_custom_call.1} parent=0
    _
  %s6 = ssub.s32 1, %s4
  %s7 = scalar_select 0, %s6, %s4
  $region1: #{tpu_custom_call.1} parent=0
    #allocation2 [shape = 'u8[4096]{0}', space=vmem, size = 0x1000, scoped, tag = 'input window, operand 0, single buffered']
    #allocation3 [shape = 's32[1]{0}', space=sflag, size = 0x4, scoped, tag = 'scoped memory for tpu_custom_call.1']
    #allocation4 [shape = 's32[1]{0}', space=sflag, size = 0x4, scoped, tag = 'scoped memory for tpu_custom_call.1']
    #allocation5 [shape = 'u8[16384]{0}', space=vmem, size = 0x4000, scoped, tag = 'input window, operand 1, single buffered']
    #allocation6 [shape = 's32[1]{0}', space=sflag, size = 0x4, scoped, tag = 'scoped memory for tpu_custom_call.1']
    #allocation7 [shape = 'u8[4096]{0}', space=vmem, size = 0x1000, scoped, tag = 'output window, operand 0, single buffered']
    %8 = vsyncpa [#allocation3], 0
    %9 = vsyncpa [#allocation6], 0
    %10 = vsyncpa [#allocation4], 0
    // Predicated region
    $region2: #{tpu_custom_call.1} parent=1 // pred_check
      _
    $region3: #{tpu_custom_call.1} parent=1 // pred_check_branch
      %12 = sbr.rel (0) target = $region5
    $region4: #{tpu_custom_call.1} parent=1 // pred_region
      %s14 = ssub.s32 128, 128
      %15 = vsyncadd [#allocation3], %s14
      %s17 = sshll.u32 [#allocation2], 4
      %s18 = int_to_ptr.vmem [resolvable:$true] %s17
      %20 = dma.hbm_to_vmem [thread:$0]  %s0, 128, %s18, [#allocation3]
    $region5: #{tpu_custom_call.1} parent=1 // pred_fallthru
      _
    // Predicated region
    $region6: #{tpu_custom_call.1} parent=1 // pred_check
      _
    $region7: #{tpu_custom_call.1} parent=1 // pred_check_branch
      %22 = sbr.rel (0) target = $region9
    $region8: #{tpu_custom_call.1} parent=1 // pred_region
      %s24 = ssub.s32 512, 512
      %25 = vsyncadd [#allocation6], %s24
      %s26 = sshll.u32 [#allocation5], 4
      %s27 = int_to_ptr.vmem [resolvable:$true] %s26
      %32 = dma.hbm_to_vmem [thread:$0]  %s1, 512, %s27, [#allocation6], 128, 128, 8
    $region9: #{tpu_custom_call.1} parent=1 // pred_fallthru
      _
    // Predicated region
    $region10: #{tpu_custom_call.1} parent=1 // pred_check
      _
    $region11: #{tpu_custom_call.1} parent=1 // pred_check_branch
      %34 = sbr.rel (0) target = $region13
    $region12: #{tpu_custom_call.1} parent=1 // pred_region
      _
    $region13: #{tpu_custom_call.1} parent=1 // pred_fallthru
      _
    // Predicated region
    $region14: #{tpu_custom_call.1} parent=1 // pred_check
      _
    $region15: #{tpu_custom_call.1} parent=1 // pred_check_branch
      %36 = sbr.rel (0) target = $region17
    $region16: #{tpu_custom_call.1} parent=1 // pred_region
      %37 = dma.done [#allocation3], 128
    $region17: #{tpu_custom_call.1} parent=1 // pred_fallthru
      _
    // Predicated region
    $region18: #{tpu_custom_call.1} parent=1 // pred_check
      _
    $region19: #{tpu_custom_call.1} parent=1 // pred_check_branch
      %39 = sbr.rel (0) target = $region21
    $region20: #{tpu_custom_call.1} parent=1 // pred_region
      %40 = dma.done [#allocation6], 512
    $region21: #{tpu_custom_call.1} parent=1 // pred_fallthru
      _
    %v41 = vld [vmem:[#allocation2] sm:$0xff]
    %v42 = vld [vmem:[#allocation5] sm:$0xff]
    %v43 = vld [vmem:[#allocation5 + $0x8] sm:$0xff]
    %v44 = vld [vmem:[#allocation5 + $0x10] sm:$0xff]
    %v45 = vld [vmem:[#allocation5 + $0x18] sm:$0xff]
    %v46 = vld [vmem:[%s2] sm:$0x1]
    %v48 = vlaneseq
    %v49 = vshrl.u32 %v48, 7
    %v50 = vsub.s32 0, %v49
    %v51 = vrot.slane %v46, %v50
    %vm53 = vcmask 261120
    %v55 = vsel %vm53, %v41, 0
    %57 = vmatprep.subr.mxu0 0.0
    %58 = vmatpush1.msra.mxu0 0.0
    %59 = vmatprep.subr.mxu0 0.0
    %60 = vmatpush1.msra.mxu0 0.0
    %61 = vmatprep.subr.mxu0 0.0
    %62 = vmatpush1.msra.mxu0 0.0
    %63 = vmatprep.subr.mxu0 0.0
    %64 = vmatpush1.msra.mxu0 0.0
    %65 = vmatprep.subr.mxu0 0.0
    %66 = vmatpush1.msra.mxu0 0.0
    %67 = vmatprep.subr.mxu0 0.0
    %68 = vmatpush1.msra.mxu0 0.0
    %69 = vmatprep.subr.mxu0 0.0
    %70 = vmatpush1.msra.mxu0 0.0
    %71 = vmatprep.subr.mxu0 0.0
    %72 = vmatpush1.msra.mxu0 0.0
    %73 = vmatprep.subr.mxu0 0.0
    %74 = vmatpush1.msra.mxu0 0.0
    %75 = vmatprep.subr.mxu0 0.0
    %76 = vmatpush1.msra.mxu0 0.0
    %77 = vmatprep.subr.mxu0 0.0
    %78 = vmatpush1.msra.mxu0 0.0
    %79 = vmatprep.subr.mxu0 0.0
    %80 = vmatpush1.msra.mxu0 0.0
    %81 = vmatprep.subr.mxu0 0.0
    %82 = vmatpush1.msra.mxu0 %v45
    %83 = vmatprep.subr.mxu0 0.0
    %84 = vmatpush1.msra.mxu0 %v44
    %85 = vmatprep.subr.mxu0 0.0
    %86 = vmatpush1.msra.mxu0 %v43
    %87 = vmatprep.subr.mxu0 0.0
    %88 = vmatpush1.msra.mxu0 %v42
    %89 = vmatprep.subr.mxu0 0.0
    %90 = vmatpush2.msra.mxu0 0.0
    %91 = vmatprep.subr.mxu0 0.0
    %92 = vmatpush2.msra.mxu0 0.0
    %93 = vmatprep.subr.mxu0 0.0
    %94 = vmatpush2.msra.mxu0 0.0
    %95 = vmatprep.subr.mxu0 0.0
    %96 = vmatpush2.msra.mxu0 0.0
    %97 = vmatprep.subr.mxu0 0.0
    %98 = vmatpush2.msra.mxu0 0.0
    %99 = vmatprep.subr.mxu0 0.0
    %100 = vmatpush2.msra.mxu0 0.0
    %101 = vmatprep.subr.mxu0 0.0
    %102 = vmatpush2.msra.mxu0 0.0
    %103 = vmatprep.subr.mxu0 0.0
    %104 = vmatpush2.msra.mxu0 0.0
    %105 = vmatprep.subr.mxu0 0.0
    %106 = vmatpush2.msra.mxu0 0.0
    %107 = vmatprep.subr.mxu0 0.0
    %108 = vmatpush2.msra.mxu0 0.0
    %109 = vmatprep.subr.mxu0 0.0
    %110 = vmatpush2.msra.mxu0 0.0
    %111 = vmatprep.subr.mxu0 0.0
    %112 = vmatpush2.msra.mxu0 0.0
    %113 = vmatprep.subr.mxu0 0.0
    %114 = vmatpush2.msra.mxu0 0.0
    %115 = vmatprep.subr.mxu0 0.0
    %116 = vmatpush2.msra.mxu0 0.0
    %117 = vmatprep.subr.mxu0 0.0
    %118 = vmatpush2.msra.mxu0 0.0
    %119 = vmatprep.subr.mxu0 0.0
    %120 = vmatpush2.msra.mxu0 0.0
    %121 = vmatprep.mubr.f32.mxu0 0.0
    %122 = vmatmul.mubr.f32.gmra.mxu0 %v55
    %v123 = vpop.f32.mrf.mxu0
    %v124 = vadd.f32 %v51, %v123
    %v125 = vpop.f32.mrf.mxu0
    %126 = vdwg.mxu0
    %127 = vst [vmem:[#allocation7] sm:$0xff] %v124
    // Predicated region
    $region22: #{tpu_custom_call.1} parent=1 // pred_check
      _
    $region23: #{tpu_custom_call.1} parent=1 // pred_check_branch
      %129 = sbr.rel (0) target = $region25
    $region24: #{tpu_custom_call.1} parent=1 // pred_region
      %s131 = ssub.s32 128, 128
      %132 = vsyncadd [#allocation4], %s131
      %s134 = sshll.u32 [#allocation7], 4
      %s135 = int_to_ptr.vmem [resolvable:$true] %s134
      %137 = dma.vmem_to_hbm [thread:$0]  %s135, 128, %s3, [#allocation4]
    $region25: #{tpu_custom_call.1} parent=1 // pred_fallthru
      _
    // Predicated region
    $region26: #{tpu_custom_call.1} parent=1 // pred_check
      _
    $region27: #{tpu_custom_call.1} parent=1 // pred_check_branch
      %139 = sbr.rel (0) target = $region29
    $region28: #{tpu_custom_call.1} parent=1 // pred_region
      %140 = dma.done [#allocation4], 128
    $region29: #{tpu_custom_call.1} parent=1 // pred_fallthru
      _
    %141 = vsyncpa [#allocation3], 1
    %142 = vsyncpa [#allocation6], 1
    %143 = vsyncpa [#allocation4], 1

</llo_original>
